<compile_context>
chip_gen: v7x
topology: tpu7x:2x2x1
jax: 0.10.0
libtpu: 0.0.40
codegen_flags: <defaults>
</compile_context>

<pallas_src>
import functools
import jax
import jax.numpy as jnp
from jax.experimental import pallas as pl
from jax.experimental.pallas import tpu as pltpu


def _ow_tile_kernel(x_ref, lbl_ref, mavt_ref, invt_ref, sum_ref, cnt_ref,
                    *, delta, hinged, tile, hw, tiles_per_chunk):
    c = pl.program_id(0)   # parallel pixel-chunk (megacore split on v7x)
    n = pl.program_id(1)   # batch image
    i = pl.program_id(2)   # pixel tile within this chunk

    # Zero this chunk's accumulators on its first grid step.
    @pl.when((n == 0) & (i == 0))
    def _():
        sum_ref[...] = jnp.zeros_like(sum_ref)
        cnt_ref[...] = jnp.zeros_like(cnt_ref)

    x = x_ref[0].astype(jnp.float32)       # (C, T) logits tile, pixels on lanes
    lbl = lbl_ref[0]                       # (1, T) int32 labels
    mav_t = mavt_ref[...]                  # (C, L) previous MAVs (transposed)
    inv_t = invt_ref[...]                  # (C, L) 1 / (norm_variance + smooth)
    C, T = x.shape
    L = mav_t.shape[1]

    # Lane validity: global pixel index vs. true pixel count. Covers (a) the
    # padded tail of the image and (b) chunk-overrun duplicate tiles whose
    # block index was clamped in the index_map.
    tile_idx = c * tiles_per_chunk + i
    px0 = tile_idx * tile
    lane = jax.lax.broadcasted_iota(jnp.int32, (1, T), 1)
    valid = (px0 + lane) < hw              # (1, T) bool

    lbl_v = jnp.where(valid, lbl, -1)      # invalid lanes match no class
    cls = jax.lax.broadcasted_iota(jnp.int32, (L, T), 0)
    onehot = (lbl_v == cls).astype(jnp.float32)        # (L, T)

    # Gather each pixel's own MAV / inv-variance row on the MXU (contract L).
    mav_g = jnp.dot(mav_t, onehot, preferred_element_type=jnp.float32)  # (C, T)
    inv_g = jnp.dot(inv_t, onehot, preferred_element_type=jnp.float32)  # (C, T)

    # Variance-weighted (optionally hinged) L1 against the pixel's own MAV.
    ew = jnp.abs(x - mav_g) * inv_g
    if hinged:
        ew = jnp.maximum(ew - delta, 0.0)
    # Select (not multiply) so garbage logits in invalid lanes cannot leak NaN.
    ew = jnp.where(valid, ew, 0.0)                      # (C, T)

    # Per-label per-channel partial sums on the MXU (contract the pixel axis):
    # contrib[l, c] = sum_t onehot[l, t] * ew[c, t]    (A @ B^T pattern)
    contrib = jax.lax.dot_general(
        onehot, ew, (((1,), (1,)), ((), ())),
        preferred_element_type=jnp.float32)             # (L, C)
    sum_ref[...] += contrib[None]

    # Per-label pixel counts (tiny lane reduce, once per multi-K-pixel tile).
    cnt_ref[...] += jnp.sum(onehot, axis=1, keepdims=True)[None]


def _pick_tile(hw_pad, tile_req):
    """Largest multiple of 128 that divides hw_pad and is <= tile_req."""
    m = hw_pad // 128
    kmax = max(1, min(m, max(1, tile_req // 128)))
    for k in range(kmax, 0, -1):
        if m % k == 0:
            return 128 * k
    return 128


def ow_loss_forward(logits, sem_gt, prev_features, prev_count, var,
                    *, hinged=True, delta=0.1, smooth=0.01,
                    void_label=-1, applied=True, is_train=True,
                    tile=8192, num_chunks=2):
    """OWLoss.forward: logits (N, C, H, W), sem_gt (N, H, W) int. Returns scalar loss."""
    # TODO(synk): cumulate() only updates training-time running statistics
    # (features/ex/ex2/count) and never affects the value returned by forward(),
    # so that stateful bookkeeping is not reproduced here.
    if prev_features is None:
        return jnp.float32(0.0)
    if not applied:
        return jnp.float32(0.0)

    N, C, H, W = logits.shape
    L = C  # n_classes == channel count
    HW = H * W
    hw_pad = ((HW + 127) // 128) * 128

    # NCHW-native: free reshape keeps pixels contiguous on the lane axis.
    # Keep the input dtype (bf16 logits DMA as bf16; cast to f32 inside kernel).
    x3 = logits.reshape(N, C, HW)
    lbl3 = sem_gt.reshape(N, 1, HW).astype(jnp.int32)
    if hw_pad != HW:
        # Fallback only when H*W is not a multiple of 128 (<= 127 extra cols).
        x3 = jnp.pad(x3, ((0, 0), (0, 0), (0, hw_pad - HW)))
        lbl3 = jnp.pad(lbl3, ((0, 0), (0, 0), (0, hw_pad - HW)),
                       constant_values=-1)

    T = _pick_tile(hw_pad, int(tile))
    n_tiles = hw_pad // T
    chunks = max(1, min(int(num_chunks), n_tiles))
    tpc = (n_tiles + chunks - 1) // chunks              # tiles per chunk

    # Per-label variance normalisation (tiny LxC preprocessing, plain JAX):
    #   variance[var > 0] <- min |var[var > 0]| ;  norm_var = variance / min
    var_f = var.astype(jnp.float32)
    pos = var_f > 0
    big = jnp.finfo(jnp.float32).max
    nz_min = jnp.min(jnp.where(pos, jnp.abs(var_f), big), axis=1, keepdims=True)
    variance = jnp.where(pos, nz_min, var_f)
    norm_var = variance / nz_min
    inv_t = (1.0 / (norm_var + smooth)).astype(jnp.float32).T      # (C, L)
    mav_t = prev_features.astype(jnp.float32).T                    # (C, L)

    kernel = functools.partial(_ow_tile_kernel, delta=float(delta),
                               hinged=bool(hinged), tile=T, hw=HW,
                               tiles_per_chunk=tpc)

    def px_map(c, n, i):
        return (n, 0, jnp.minimum(c * tpc + i, n_tiles - 1))

    sums, cnts = pl.pallas_call(
        kernel,
        out_shape=(jax.ShapeDtypeStruct((chunks, L, C), jnp.float32),
                   jax.ShapeDtypeStruct((chunks, L, 1), jnp.float32)),
        grid=(chunks, N, tpc),
        in_specs=[pl.BlockSpec((1, C, T), px_map),
                  pl.BlockSpec((1, 1, T), px_map),
                  pl.BlockSpec((C, L), lambda c, n, i: (0, 0)),
                  pl.BlockSpec((C, L), lambda c, n, i: (0, 0))],
        out_specs=(pl.BlockSpec((1, L, C), lambda c, n, i: (c, 0, 0)),
                   pl.BlockSpec((1, L, 1), lambda c, n, i: (c, 0, 0))),
        compiler_params=pltpu.CompilerParams(
            dimension_semantics=("parallel", "arbitrary", "arbitrary")),
    )(x3, lbl3, mav_t, inv_t)

    counts = jnp.sum(cnts, axis=0)[:, 0]                # (L,) pixels per label
    per_label_sum = jnp.sum(sums, axis=(0, 2))          # (L,) sum over chunks+channels
    # ew_l1.mean() over the (n_pix, C) matrix of that label.
    per_label_mean = jnp.where(counts > 0, per_label_sum / (counts * C), 0.0)
    per_label_mean = jnp.where(jnp.isnan(per_label_mean), 0.0, per_label_mean)

    # torch.unique is sorted; the loop runs over gt_labels[1:], i.e. skips the
    # smallest label present in sem_gt (usually the void label -1).
    min_present = jnp.min(sem_gt)
    lbl_ids = jnp.arange(L)
    include = ((counts > 0)
               & (lbl_ids != min_present)
               & (prev_count.astype(jnp.float32) > 0)
               & (jnp.sum(var_f, axis=1) != 0))
    acc = jnp.sum(jnp.where(include, per_label_mean, 0.0))
    return jnp.clip(acc, 0.0, 20.0)


if __name__ == "__main__":
    key = jax.random.PRNGKey(0)
    k1, k2, k3, k4 = jax.random.split(key, 4)

    n_classes = 8
    N, H, W = 2, 16, 16

    # Deterministic synthetic inputs and module state
    # (previous_features / previous_count / var).
    logits = jax.random.normal(k1, (N, n_classes, H, W), jnp.float32)
    sem_gt = jax.random.randint(k2, (N, H, W), -1, n_classes, jnp.int32)        # includes void -1
    prev_features = jax.random.normal(k3, (n_classes, n_classes), jnp.float32)  # stacked MAV dict
    prev_count = jnp.arange(n_classes, dtype=jnp.float32)                        # label 0 has count 0
    var = jnp.abs(jax.random.normal(k4, (n_classes, n_classes), jnp.float32)) + 0.05

    loss = ow_loss_forward(logits, sem_gt, prev_features, prev_count, var,
                           hinged=True, delta=0.1, applied=True, is_train=True)
    jax.block_until_ready(loss)
    print("KERNEL_OK")
</pallas_src>

<mosaic_0001>
module attributes {stable_mosaic.version = 11 : i64} {
  func.func @_ow_tile_kernel(%arg0: i32, %arg1: i32, %arg2: i32, %arg3: memref<1x8x256xf32, #tpu.memory_space<vmem>>, %arg4: memref<1x1x256xi32, #tpu.memory_space<vmem>>, %arg5: memref<8x8xf32, #tpu.memory_space<vmem>>, %arg6: memref<8x8xf32, #tpu.memory_space<vmem>>, %arg7: memref<1x8x8xf32, #tpu.memory_space<vmem>>, %arg8: memref<1x8x1xf32, #tpu.memory_space<vmem>>) attributes {dimension_semantics = [#tpu.dimension_semantics<parallel>, #tpu.dimension_semantics<arbitrary>, #tpu.dimension_semantics<arbitrary>], iteration_bounds = array<i64: 1, 2, 1>, scalar_prefetch = 0 : i64, scratch_operands = 0 : i64, tpu.core_type = #tpu.core_type<tc>, window_params = [{transform_indices = @transform_0, window_bounds = array<i64: 1, 8, 256>}, {transform_indices = @transform_1, window_bounds = array<i64: 1, 1, 256>}, {pipeline_mode = #tpu.pipeline_mode<synchronous>, transform_indices = @transform_2, window_bounds = array<i64: 8, 8>}, {pipeline_mode = #tpu.pipeline_mode<synchronous>, transform_indices = @transform_3, window_bounds = array<i64: 8, 8>}, {transform_indices = @transform_4, window_bounds = array<i64: 1, 8, 8>}, {transform_indices = @transform_5, window_bounds = array<i64: 1, 8, 1>}]} {
    %c0_i32 = arith.constant 0 : i32
    %0 = arith.cmpi eq, %arg1, %c0_i32 : i32
    %c0_i32_0 = arith.constant 0 : i32
    %1 = arith.cmpi eq, %arg2, %c0_i32_0 : i32
    %2 = arith.andi %0, %1 : i1
    %3 = arith.extui %2 : i1 to i32
    %c0_i32_1 = arith.constant 0 : i32
    %4 = arith.cmpi ne, %3, %c0_i32_1 : i32
    scf.if %4 {
      %cst_30 = arith.constant 0.000000e+00 : f32
      %50 = vector.broadcast %cst_30 : f32 to vector<1x8x8xf32>
      %c0_31 = arith.constant 0 : index
      %c0_32 = arith.constant 0 : index
      %c0_33 = arith.constant 0 : index
      %51 = vector.load %arg7[%c0_31, %c0_32, %c0_33] : memref<1x8x8xf32, #tpu.memory_space<vmem>>, vector<1x8x8xf32>
      tpu.vector_store %arg7[%c0_31, %c0_32, %c0_33], %50 {strides = array<i32>} : memref<1x8x8xf32, #tpu.memory_space<vmem>>, vector<1x8x8xf32>,
      %cst_34 = arith.constant 0.000000e+00 : f32
      %52 = vector.broadcast %cst_34 : f32 to vector<1x8x1xf32>
      %c0_35 = arith.constant 0 : index
      %c0_36 = arith.constant 0 : index
      %c0_37 = arith.constant 0 : index
      %53 = vector.load %arg8[%c0_35, %c0_36, %c0_37] : memref<1x8x1xf32, #tpu.memory_space<vmem>>, vector<1x8x1xf32>
      tpu.vector_store %arg8[%c0_35, %c0_36, %c0_37], %52 {strides = array<i32>} : memref<1x8x1xf32, #tpu.memory_space<vmem>>, vector<1x8x1xf32>,
    } else {
    }
    %c0 = arith.constant 0 : index
    %c0_2 = arith.constant 0 : index
    %c0_3 = arith.constant 0 : index
    %5 = vector.load %arg3[%c0, %c0_2, %c0_3] : memref<1x8x256xf32, #tpu.memory_space<vmem>>, vector<1x8x256xf32>
    %6 = vector.shape_cast %5 : vector<1x8x256xf32> to vector<8x256xf32>
    %c0_4 = arith.constant 0 : index
    %c0_5 = arith.constant 0 : index
    %c0_6 = arith.constant 0 : index
    %7 = vector.load %arg4[%c0_4, %c0_5, %c0_6] : memref<1x1x256xi32, #tpu.memory_space<vmem>>, vector<1x1x256xi32>
    %8 = vector.shape_cast %7 : vector<1x1x256xi32> to vector<1x256xi32>
    %c0_7 = arith.constant 0 : index
    %c0_8 = arith.constant 0 : index
    %9 = vector.load %arg5[%c0_7, %c0_8] : memref<8x8xf32, #tpu.memory_space<vmem>>, vector<8x8xf32>
    %c0_9 = arith.constant 0 : index
    %c0_10 = arith.constant 0 : index
    %10 = vector.load %arg6[%c0_9, %c0_10] : memref<8x8xf32, #tpu.memory_space<vmem>>, vector<8x8xf32>
    %c1_i32 = arith.constant 1 : i32
    %11 = arith.muli %arg0, %c1_i32 : i32
    %12 = arith.addi %11, %arg2 : i32
    %c256_i32 = arith.constant 256 : i32
    %13 = arith.muli %12, %c256_i32 : i32
    %14 = tpu.iota {dimensions = array<i32: 1>} : vector<1x256xi32>
    %15 = vector.broadcast %13 : i32 to vector<1x256xi32>
    %16 = arith.addi %15, %14 : vector<1x256xi32>
    %c256_i32_11 = arith.constant 256 : i32
    %17 = vector.broadcast %c256_i32_11 : i32 to vector<1x256xi32>
    %18 = arith.cmpi slt, %16, %17 : vector<1x256xi32>
    %c-1_i32 = arith.constant -1 : i32
    %19 = vector.broadcast %c-1_i32 : i32 to vector<1x256xi32>
    %20 = arith.select %18, %8, %19 : vector<1x256xi1>, vector<1x256xi32>
    %21 = tpu.iota {dimensions = array<i32: 0>} : vector<8x256xi32>
    %22 = vector.broadcast %20 : vector<1x256xi32> to vector<8x256xi32>
    %23 = arith.cmpi eq, %22, %21 : vector<8x256xi32>
    %24 = arith.extui %23 : vector<8x256xi1> to vector<8x256xi32>
    %25 = arith.sitofp %24 : vector<8x256xi32> to vector<8x256xf32>
    %cst = arith.constant dense<0.000000e+00> : vector<8x256xf32>
    %26 = tpu.matmul %9, %25, %cst {dimension_numbers = #tpu.dot_dimension_numbers<[1], [0], [0], [1], [0, 0, 1, 1], [], []>} : vector<8x8xf32>, vector<8x256xf32>, vector<8x256xf32> -> vector<8x256xf32>
    %cst_12 = arith.constant dense<0.000000e+00> : vector<8x256xf32>
    %27 = tpu.matmul %10, %25, %cst_12 {dimension_numbers = #tpu.dot_dimension_numbers<[1], [0], [0], [1], [0, 0, 1, 1], [], []>} : vector<8x8xf32>, vector<8x256xf32>, vector<8x256xf32> -> vector<8x256xf32>
    %28 = arith.subf %6, %26 : vector<8x256xf32>
    %29 = math.absf %28 : vector<8x256xf32>
    %30 = arith.mulf %29, %27 : vector<8x256xf32>
    %cst_13 = arith.constant 1.000000e-01 : f32
    %31 = vector.broadcast %cst_13 : f32 to vector<8x256xf32>
    %32 = arith.subf %30, %31 : vector<8x256xf32>
    %cst_14 = arith.constant 0.000000e+00 : f32
    %33 = vector.broadcast %cst_14 : f32 to vector<8x256xf32>
    %34 = arith.maximumf %32, %33 : vector<8x256xf32>
    %cst_15 = arith.constant 0.000000e+00 : f32
    %35 = vector.shape_cast %18 : vector<1x256xi1> to vector<1x256xi1>
    %36 = vector.broadcast %35 : vector<1x256xi1> to vector<8x256xi1>
    %37 = vector.broadcast %cst_15 : f32 to vector<8x256xf32>
    %38 = arith.select %36, %34, %37 : vector<8x256xi1>, vector<8x256xf32>
    %cst_16 = arith.constant dense<0.000000e+00> : vector<8x8xf32>
    %39 = tpu.matmul %25, %38, %cst_16 {dimension_numbers = #tpu.dot_dimension_numbers<[1], [1], [0], [0], [0, 0, 1, 0], [], []>} : vector<8x256xf32>, vector<8x256xf32>, vector<8x8xf32> -> vector<8x8xf32>
    %c0_17 = arith.constant 0 : index
    %c0_18 = arith.constant 0 : index
    %c0_19 = arith.constant 0 : index
    %40 = vector.load %arg7[%c0_17, %c0_18, %c0_19] : memref<1x8x8xf32, #tpu.memory_space<vmem>>, vector<1x8x8xf32>
    %41 = vector.shape_cast %39 : vector<8x8xf32> to vector<1x8x8xf32>
    %42 = arith.addf %40, %41 : vector<1x8x8xf32>
    %c0_20 = arith.constant 0 : index
    %c0_21 = arith.constant 0 : index
    %c0_22 = arith.constant 0 : index
    %43 = vector.load %arg7[%c0_20, %c0_21, %c0_22] : memref<1x8x8xf32, #tpu.memory_space<vmem>>, vector<1x8x8xf32>
    tpu.vector_store %arg7[%c0_20, %c0_21, %c0_22], %42 {strides = array<i32>} : memref<1x8x8xf32, #tpu.memory_space<vmem>>, vector<1x8x8xf32>,
    %c0_23 = arith.constant 0 : index
    %c0_24 = arith.constant 0 : index
    %c0_25 = arith.constant 0 : index
    %44 = vector.load %arg8[%c0_23, %c0_24, %c0_25] : memref<1x8x1xf32, #tpu.memory_space<vmem>>, vector<1x8x1xf32>
    %cst_26 = arith.constant dense<0.000000e+00> : vector<8xf32>
    %45 = vector.multi_reduction <add>, %25, %cst_26 [1] : vector<8x256xf32> to vector<8xf32>
    %46 = vector.shape_cast %45 : vector<8xf32> to vector<8x1xf32>
    %47 = vector.shape_cast %46 : vector<8x1xf32> to vector<1x8x1xf32>
    %48 = arith.addf %44, %47 : vector<1x8x1xf32>
    %c0_27 = arith.constant 0 : index
    %c0_28 = arith.constant 0 : index
    %c0_29 = arith.constant 0 : index
    %49 = vector.load %arg8[%c0_27, %c0_28, %c0_29] : memref<1x8x1xf32, #tpu.memory_space<vmem>>, vector<1x8x1xf32>
    tpu.vector_store %arg8[%c0_27, %c0_28, %c0_29], %48 {strides = array<i32>} : memref<1x8x1xf32, #tpu.memory_space<vmem>>, vector<1x8x1xf32>,
    return
  }
  func.func @transform_0(%arg0: i32, %arg1: i32, %arg2: i32) -> (i32, i32, i32) {
    %c1_i32 = arith.constant 1 : i32
    %0 = arith.muli %arg0, %c1_i32 : i32
    %1 = arith.addi %0, %arg2 : i32
    %c0_i32 = arith.constant 0 : i32
    %2 = arith.minsi %1, %c0_i32 : i32
    %c0_i32_0 = arith.constant 0 : i32
    %c0_i32_1 = arith.constant 0 : i32
    return %arg1, %c0_i32_0, %2 : i32, i32, i32
  }
  func.func @transform_1(%arg0: i32, %arg1: i32, %arg2: i32) -> (i32, i32, i32) {
    %c1_i32 = arith.constant 1 : i32
    %0 = arith.muli %arg0, %c1_i32 : i32
    %1 = arith.addi %0, %arg2 : i32
    %c0_i32 = arith.constant 0 : i32
    %2 = arith.minsi %1, %c0_i32 : i32
    %c0_i32_0 = arith.constant 0 : i32
    %c0_i32_1 = arith.constant 0 : i32
    return %arg1, %c0_i32_0, %2 : i32, i32, i32
  }
  func.func @transform_2(%arg0: i32, %arg1: i32, %arg2: i32) -> (i32, i32) {
    %c0_i32 = arith.constant 0 : i32
    %c0_i32_0 = arith.constant 0 : i32
    %c0_i32_1 = arith.constant 0 : i32
    return %c0_i32, %c0_i32_0 : i32, i32
  }
  func.func @transform_3(%arg0: i32, %arg1: i32, %arg2: i32) -> (i32, i32) {
    %c0_i32 = arith.constant 0 : i32
    %c0_i32_0 = arith.constant 0 : i32
    %c0_i32_1 = arith.constant 0 : i32
    return %c0_i32, %c0_i32_0 : i32, i32
  }
  func.func @transform_4(%arg0: i32, %arg1: i32, %arg2: i32) -> (i32, i32, i32) {
    %c0_i32 = arith.constant 0 : i32
    %c0_i32_0 = arith.constant 0 : i32
    %c0_i32_1 = arith.constant 0 : i32
    return %arg0, %c0_i32, %c0_i32_0 : i32, i32, i32
  }
  func.func @transform_5(%arg0: i32, %arg1: i32, %arg2: i32) -> (i32, i32, i32) {
    %c0_i32 = arith.constant 0 : i32
    %c0_i32_0 = arith.constant 0 : i32
    %c0_i32_1 = arith.constant 0 : i32
    return %arg0, %c0_i32, %c0_i32_0 : i32, i32, i32
  }
}

</mosaic_0001>

<llo_original>
// kernel: tpu_custom_call.1
$region0: #{tpu_custom_call.1}
  #allocation0 [shape = 'u32[]', space=smem, size = 0x4, offset = 0x4, fixed_abs, tag = 'smem constant byte address 0x4 - core index']
  #allocation1 [shape = 'u32[144,128]{1,0:T(1,128)}', space=vmem, size = 0x12000, scoped, tag = 'internal scratch']
  %s0 = inlined_call_operand.hbm [shape: f32[2,8,256], index: 0, kind: input, shape index: {}]
  %s1 = inlined_call_operand.hbm [shape: s32[2,1,256], index: 1, kind: input, shape index: {}]
  %s2 = inlined_call_operand.hbm [shape: f32[8,8], index: 2, kind: input, shape index: {}]
  %s3 = inlined_call_operand.vmem [shape: f32[8,8], index: 3, kind: input, shape index: {}]
  %s4 = inlined_call_operand.hbm [shape: f32[1,8,8], index: 4, kind: output, shape index: {0}]
  %s5 = inlined_call_operand.vmem [shape: f32[1,8,1], index: 5, kind: output, shape index: {1}]
  %6 = xla_tuple %s4, %s5
  %s7 = sld [smem:[#allocation0]]
  $region73: #{tpu_custom_call.1} parent=0
    _
  %s9 = ssub.s32 1, %s7
  %s10 = scalar_select 0, %s9, %s7
  $region1: #{tpu_custom_call.1} parent=0
    #allocation2 [shape = 'u8[16384]{0}', space=vmem, size = 0x4000, scoped, tag = 'input window, operand 0']
    #allocation3 [shape = 's32[2]{0}', space=sflag, size = 0x8, scoped, tag = 'scoped memory for tpu_custom_call.1']
    #allocation4 [shape = 's32[2]{0}', space=sflag, size = 0x8, scoped, tag = 'scoped memory for tpu_custom_call.1']
    #allocation5 [shape = 'u8[2048]{0}', space=vmem, size = 0x800, scoped, tag = 'input window, operand 1']
    #allocation6 [shape = 's32[2]{0}', space=sflag, size = 0x8, scoped, tag = 'scoped memory for tpu_custom_call.1']
    #allocation7 [shape = 'u8[4096]{0}', space=vmem, size = 0x1000, scoped, tag = 'input window, operand 2, single buffered']
    #allocation8 [shape = 'u8[4096]{0}', space=vmem, size = 0x1000, scoped, tag = 'output window, operand 0, single buffered']
    %11 = vsyncpa [#allocation3], 0
    %s12 = scalar_lea.sflag [#allocation3], 1
    %13 = vsyncpa %s12, 0
    %14 = vsyncpa [#allocation6], 0
    %s15 = scalar_lea.sflag [#allocation6], 1
    %16 = vsyncpa %s15, 0
    %17 = vsyncpa [#allocation4], 0
    loop: start=0, step=1, limit=4
    $region2: #{tpu_custom_call.1} parent=1 // loop_pre_header
      _
    $region3: #{tpu_custom_call.1} parent=1 // loop_header
      %s19 = sphi 0, %s23
      %p20 = scmp.ge.s32.totalorder %s19, 4
      %s26 = sphi 0, %s45
      %s27 = sphi 0, %s41
      %s28 = sphi 0, %s37
      %s29 = sphi 0, %s26
      %s30 = sphi 0, %s27
      %s31 = sphi 0, %s28
      %s32 = sphi 0, %s29
      %s33 = sphi 0, %s30
      %s34 = sphi 0, %s31
      %s56 = sphi 0, %s58
      %s59 = sphi 0, %s56
      %s60 = sphi 0, %s59
      %s76 = sphi 0, %s60
      %s90 = sphi 0, %s92
      %s93 = sphi 0, %s90
      %s94 = sphi 0, %s93
      %s110 = sphi 0, %s94
      %s114 = sphi 0, %s114
      %s116 = sphi 0, %s114
      %s117 = sphi 0, %s116
      %s131 = sphi 0, %s117
      %s135 = sphi 0, %s135
      %s137 = sphi 0, %s135
      %s138 = sphi 0, %s137
      %s152 = sphi 0, %s138
      %s158 = sphi 0, %s160
      %s161 = sphi 0, %s158
      %s162 = sphi 0, %s161
      %s178 = sphi 0, %s162
      %s184 = sphi 0, %s186
      %s187 = sphi 0, %s184
      %s188 = sphi 0, %s187
      %s204 = sphi 0, %s188
    $region4: #{tpu_custom_call.1} parent=1 // loop_header_branch
      %22 = sbr.rel (%p20) target = $region8
    $region5: #{tpu_custom_call.1} parent=1 // loop_body
      %s24 = ssub.s32 %s19, 1
      %s25 = ssub.s32 %s19, 2
      %s35 = sadd.s32 1, %s28
      %p36 = scmp.ge.s32.totalorder %s35, 1
      %s37 = scalar_select %p36, 0, %s35
      %s38 = sadd.s32 1, %s27
      %s39 = scalar_select %p36, %s38, %s27
      %p40 = scmp.ge.s32.totalorder %s39, 2
      %s41 = scalar_select %p40, 0, %s39
      %s42 = sadd.s32 1, %s26
      %s43 = scalar_select %p40, %s42, %s26
      %p44 = scmp.ge.s32.totalorder %s43, 1
      %s45 = scalar_select %p44, 0, %s43
      %s46 = sadd.s32 %s26, %s28
      %p47 = scmp.lt.s32.totalorder %s46, 0
      %s48 = scalar_select %p47, %s46, 0
      %s49 = sadd.s32 %s45, %s37
      %p50 = scmp.lt.s32.totalorder %s49, 0
      %s51 = scalar_select %p50, %s49, 0
      %s52 = ssub.s32 %s27, %s41
      %s53 = ssub.s32 %s48, %s51
      %s54 = sor.u32 %s52, %s53
      %p55 = scmp.eq.s32.totalorder %s54, 0
      %s57 = sadd.s32 %s56, 1
      %s58 = scalar_select %p55, %s56, %s57
      %p61 = pneg %p55
      %p62 = scmp.eq.s32.totalorder %s19, 1
      %p63 = por %p61, %p62
      %p64 = scmp.ne.s32.totalorder %s56, %s59
      %p65 = scmp.eq.s32.totalorder %s19, 0
      %p66 = por %p64, %p65
      %p67 = scmp.ne.s32.totalorder %s56, %s59
      %p68 = scmp.eq.s32.totalorder %s24, 1
      %p69 = por %p67, %p68
      %p70 = scmp.ne.s32.totalorder %s59, %s60
      %p71 = scmp.eq.s32.totalorder %s24, 0
      %p72 = por %p70, %p71
      %p73 = scmp.ne.s32.totalorder %s59, %s60
      %p74 = scmp.eq.s32.totalorder %s25, 1
      %p75 = por %p73, %p74
      %p77 = scmp.ne.s32.totalorder %s60, %s76
      %p78 = scmp.eq.s32.totalorder %s25, 0
      %p79 = por %p77, %p78
      %s80 = sadd.s32 %s26, %s28
      %p81 = scmp.lt.s32.totalorder %s80, 0
      %s82 = scalar_select %p81, %s80, 0
      %s83 = sadd.s32 %s45, %s37
      %p84 = scmp.lt.s32.totalorder %s83, 0
      %s85 = scalar_select %p84, %s83, 0
      %s86 = ssub.s32 %s27, %s41
      %s87 = ssub.s32 %s82, %s85
      %s88 = sor.u32 %s86, %s87
      %p89 = scmp.eq.s32.totalorder %s88, 0
      %s91 = sadd.s32 %s90, 1
      %s92 = scalar_select %p89, %s90, %s91
      %p95 = pneg %p89
      %p96 = scmp.eq.s32.totalorder %s19, 1
      %p97 = por %p95, %p96
      %p98 = scmp.ne.s32.totalorder %s90, %s93
      %p99 = scmp.eq.s32.totalorder %s19, 0
      %p100 = por %p98, %p99
      %p101 = scmp.ne.s32.totalorder %s90, %s93
      %p102 = scmp.eq.s32.totalorder %s24, 1
      %p103 = por %p101, %p102
      %p104 = scmp.ne.s32.totalorder %s93, %s94
      %p105 = scmp.eq.s32.totalorder %s24, 0
      %p106 = por %p104, %p105
      %p107 = scmp.ne.s32.totalorder %s93, %s94
      %p108 = scmp.eq.s32.totalorder %s25, 1
      %p109 = por %p107, %p108
      %p111 = scmp.ne.s32.totalorder %s94, %s110
      %p112 = scmp.eq.s32.totalorder %s25, 0
      %p113 = por %p111, %p112
      %s115 = sadd.s32 %s114, 1
      %p118 = scmp.eq.s32.totalorder %s19, 1
      %p119 = scmp.ne.s32.totalorder %s114, %s116
      %p120 = scmp.eq.s32.totalorder %s19, 0
      %p121 = por %p119, %p120
      %p122 = scmp.ne.s32.totalorder %s114, %s116
      %p123 = scmp.eq.s32.totalorder %s24, 1
      %p124 = por %p122, %p123
      %p125 = scmp.ne.s32.totalorder %s116, %s117
      %p126 = scmp.eq.s32.totalorder %s24, 0
      %p127 = por %p125, %p126
      %p128 = scmp.ne.s32.totalorder %s116, %s117
      %p129 = scmp.eq.s32.totalorder %s25, 1
      %p130 = por %p128, %p129
      %p132 = scmp.ne.s32.totalorder %s117, %s131
      %p133 = scmp.eq.s32.totalorder %s25, 0
      %p134 = por %p132, %p133
      %s136 = sadd.s32 %s135, 1
      %p139 = scmp.eq.s32.totalorder %s19, 1
      %p140 = scmp.ne.s32.totalorder %s135, %s137
      %p141 = scmp.eq.s32.totalorder %s19, 0
      %p142 = por %p140, %p141
      %p143 = scmp.ne.s32.totalorder %s135, %s137
      %p144 = scmp.eq.s32.totalorder %s24, 1
      %p145 = por %p143, %p144
      %p146 = scmp.ne.s32.totalorder %s137, %s138
      %p147 = scmp.eq.s32.totalorder %s24, 0
      %p148 = por %p146, %p147
      %p149 = scmp.ne.s32.totalorder %s137, %s138
      %p150 = scmp.eq.s32.totalorder %s25, 1
      %p151 = por %p149, %p150
      %p153 = scmp.ne.s32.totalorder %s138, %s152
      %p154 = scmp.eq.s32.totalorder %s25, 0
      %p155 = por %p153, %p154
      %s156 = ssub.s32 %s26, %s45
      %p157 = scmp.eq.s32.totalorder %s156, 0
      %s159 = sadd.s32 %s158, 1
      %s160 = scalar_select %p157, %s158, %s159
      %p163 = pneg %p157
      %p164 = scmp.eq.s32.totalorder %s19, 1
      %p165 = por %p163, %p164
      %p166 = scmp.ne.s32.totalorder %s158, %s161
      %p167 = scmp.eq.s32.totalorder %s19, 0
      %p168 = por %p166, %p167
      %p169 = scmp.ne.s32.totalorder %s158, %s161
      %p170 = scmp.eq.s32.totalorder %s24, 1
      %p171 = por %p169, %p170
      %p172 = scmp.ne.s32.totalorder %s161, %s162
      %p173 = scmp.eq.s32.totalorder %s24, 0
      %p174 = por %p172, %p173
      %p175 = scmp.ne.s32.totalorder %s161, %s162
      %p176 = scmp.eq.s32.totalorder %s25, 1
      %p177 = por %p175, %p176
      %p179 = scmp.ne.s32.totalorder %s162, %s178
      %p180 = scmp.eq.s32.totalorder %s25, 0
      %p181 = por %p179, %p180
      %s182 = ssub.s32 %s26, %s45
      %p183 = scmp.eq.s32.totalorder %s182, 0
      %s185 = sadd.s32 %s184, 1
      %s186 = scalar_select %p183, %s184, %s185
      %p189 = pneg %p183
      %p190 = scmp.eq.s32.totalorder %s19, 1
      %p191 = por %p189, %p190
      %p192 = scmp.ne.s32.totalorder %s184, %s187
      %p193 = scmp.eq.s32.totalorder %s19, 0
      %p194 = por %p192, %p193
      %p195 = scmp.ne.s32.totalorder %s184, %s187
      %p196 = scmp.eq.s32.totalorder %s24, 1
      %p197 = por %p195, %p196
      %p198 = scmp.ne.s32.totalorder %s187, %s188
      %p199 = scmp.eq.s32.totalorder %s24, 0
      %p200 = por %p198, %p199
      %p201 = scmp.ne.s32.totalorder %s187, %s188
      %p202 = scmp.eq.s32.totalorder %s25, 1
      %p203 = por %p201, %p202
      %p205 = scmp.ne.s32.totalorder %s188, %s204
      %p206 = scmp.eq.s32.totalorder %s25, 0
      %p207 = por %p205, %p206
      %p208 = scmp.le.s32.totalorder 1, %s19
      %p209 = scmp.lt.s32.totalorder %s19, 3
      %p210 = pnand %p208, %p209
      %p211 = pneg %p210
      // Predicated region
      $region9: #{tpu_custom_call.1} parent=5 // pred_check
        _
      $region10: #{tpu_custom_call.1} parent=5 // pred_check_branch
        %213 = sbr.rel (%p210) target = $region12
      $region11: #{tpu_custom_call.1} parent=5 // pred_region
        %s214 = ssub.s32 %s19, 1
        // Predicated region
        $region13: #{tpu_custom_call.1} parent=11 // pred_check
          %p215 = pneg %p127
        $region14: #{tpu_custom_call.1} parent=11 // pred_check_branch
          %217 = sbr.rel (%p215) target = $region16
        $region15: #{tpu_custom_call.1} parent=11 // pred_region
          %s219 = ssub.s32 128, 128
          %220 = vsyncadd [#allocation6], %s219
          %s222 = sshll.u32 [#allocation7], 4
          %s223 = int_to_ptr.vmem [resolvable:$true] %s222
          %225 = dma.hbm_to_vmem [thread:$0]  %s2, 128, %s223, [#allocation6]
        $region16: #{tpu_custom_call.1} parent=11 // pred_fallthru
          _
        // Predicated region
        $region17: #{tpu_custom_call.1} parent=11 // pred_check
          %p226 = pneg %p148
        $region18: #{tpu_custom_call.1} parent=11 // pred_check_branch
          %228 = sbr.rel (%p226) target = $region20
        $region19: #{tpu_custom_call.1} parent=11 // pred_region
          _
        $region20: #{tpu_custom_call.1} parent=11 // pred_fallthru
          _
      $region12: #{tpu_custom_call.1} parent=5 // pred_fallthru
        _
      %p229 = scmp.lt.s32.totalorder %s19, 2
      // Predicated region
      $region21: #{tpu_custom_call.1} parent=5 // pred_check
        %p230 = pneg %p229
      $region22: #{tpu_custom_call.1} parent=5 // pred_check_branch
        %232 = sbr.rel (%p230) target = $region24
      $region23: #{tpu_custom_call.1} parent=5 // pred_region
        // Predicated region
        $region25: #{tpu_custom_call.1} parent=23 // pred_check
          %p233 = pneg %p66
        $region26: #{tpu_custom_call.1} parent=23 // pred_check_branch
          %235 = sbr.rel (%p233) target = $region28
        $region27: #{tpu_custom_call.1} parent=23 // pred_region
          %s236 = sand.u32 %s56, 1
          %s237 = scalar_lea.sflag [#allocation3], %s236
          %s238 = sand.u32 %s56, 1
          %s239 = smul.addr %s238, 16
          %s240 = scalar_lea.vmem [#allocation2], %s239
          %s241 = sadd.s32 %s26, %s28
          %p242 = scmp.lt.s32.totalorder %s241, 0
          %s243 = scalar_select %p242, %s241, 0
          %s244 = smul.u32 2, %s243
          %s246 = ssub.s32 256, 256
          %247 = vsyncadd %s237, %s246
          %s248 = smul.addr %s27, 2
          %s249 = sadd.s32 %s244, %s248
          %s250 = smul.addr %s249, 128
          %s251 = scalar_lea.hbm %s0, %s250
          %s253 = sshll.u32 %s240, 4
          %s254 = int_to_ptr.vmem [resolvable:$true] %s253
          %256 = dma.hbm_to_vmem [thread:$0]  %s251, 256, %s254, %s237
        $region28: #{tpu_custom_call.1} parent=23 // pred_fallthru
          _
        // Predicated region
        $region29: #{tpu_custom_call.1} parent=23 // pred_check
          %p257 = pneg %p100
        $region30: #{tpu_custom_call.1} parent=23 // pred_check_branch
          %259 = sbr.rel (%p257) target = $region32
        $region31: #{tpu_custom_call.1} parent=23 // pred_region
          %s260 = sand.u32 %s19, 1
          %s261 = scalar_lea.sflag [#allocation6], %s260
          %s262 = sand.u32 %s90, 1
          %s263 = smul.addr %s262, 2
          %s264 = scalar_lea.vmem [#allocation5], %s263
          %s265 = sadd.s32 %s26, %s28
          %p266 = scmp.lt.s32.totalorder %s265, 0
          %s267 = scalar_select %p266, %s265, 0
          %s268 = smul.u32 2, %s267
          %s270 = ssub.s32 32, 32
          %271 = vsyncadd %s261, %s270
          %s272 = smul.addr %s27, 2
          %s273 = sadd.s32 %s268, %s272
          %s274 = smul.addr %s273, 16
          %s275 = scalar_lea.hbm %s1, %s274
          %s277 = sshll.u32 %s264, 4
          %s278 = int_to_ptr.vmem [resolvable:$true] %s277
          %280 = dma.hbm_to_vmem [thread:$0]  %s275, 32, %s278, %s261
        $region32: #{tpu_custom_call.1} parent=23 // pred_fallthru
          _
      $region24: #{tpu_custom_call.1} parent=5 // pred_fallthru
        _
      %p281 = scmp.le.s32.totalorder 1, %s19
      %p282 = scmp.lt.s32.totalorder %s19, 3
      %p283 = pnand %p281, %p282
      %p284 = pneg %p283
      // Predicated region
      $region33: #{tpu_custom_call.1} parent=5 // pred_check
        _
      $region34: #{tpu_custom_call.1} parent=5 // pred_check_branch
        %286 = sbr.rel (%p283) target = $region36
      $region35: #{tpu_custom_call.1} parent=5 // pred_region
        %s287 = ssub.s32 %s19, 1
        %s288 = sand.u32 %s59, 1
        %s289 = scalar_lea.sflag [#allocation3], %s288
        %s290 = sand.u32 %s59, 1
        %s291 = smul.addr %s290, 16
        %s292 = scalar_lea.vmem [#allocation2], %s291
        // Predicated region
        $region37: #{tpu_custom_call.1} parent=35 // pred_check
          %p293 = pneg %p72
        $region38: #{tpu_custom_call.1} parent=35 // pred_check_branch
          %295 = sbr.rel (%p293) target = $region40
        $region39: #{tpu_custom_call.1} parent=35 // pred_region
          %296 = dma.done %s289, 256
        $region40: #{tpu_custom_call.1} parent=35 // pred_fallthru
          _
        %s297 = sand.u32 %s24, 1
        %s298 = scalar_lea.sflag [#allocation6], %s297
        %s299 = sand.u32 %s93, 1
        %s300 = smul.addr %s299, 2
        %s301 = scalar_lea.vmem [#allocation5], %s300
        // Predicated region
        $region41: #{tpu_custom_call.1} parent=35 // pred_check
          %p302 = pneg %p106
        $region42: #{tpu_custom_call.1} parent=35 // pred_check_branch
          %304 = sbr.rel (%p302) target = $region44
        $region43: #{tpu_custom_call.1} parent=35 // pred_region
          %305 = dma.done %s298, 32
        $region44: #{tpu_custom_call.1} parent=35 // pred_fallthru
          _
        // Predicated region
        $region45: #{tpu_custom_call.1} parent=35 // pred_check
          %p306 = pneg %p127
        $region46: #{tpu_custom_call.1} parent=35 // pred_check_branch
          %308 = sbr.rel (%p306) target = $region48
        $region47: #{tpu_custom_call.1} parent=35 // pred_region
          %309 = dma.done [#allocation6], 128
        $region48: #{tpu_custom_call.1} parent=35 // pred_fallthru
          _
        %s310 = sand.u32 %s59, 1
        %s311 = scalar_lea.sflag [#allocation3], %s310
        %s312 = sand.u32 %s59, 1
        %s313 = smul.addr %s312, 16
        %s314 = scalar_lea.vmem [#allocation2], %s313
        %p315 = pneg %p72
        %p316 = pneg %p69
        %s317 = sand.u32 %s24, 1
        %s318 = scalar_lea.sflag [#allocation6], %s317
        %s319 = sand.u32 %s93, 1
        %s320 = smul.addr %s319, 2
        %s321 = scalar_lea.vmem [#allocation5], %s320
        %p322 = pneg %p106
        %p323 = pneg %p103
        %p324 = pneg %p127
        %p325 = pneg %p124
        %p326 = pneg %p148
        %p327 = pneg %p145
        %p328 = pneg %p174
        %p329 = pneg %p171
        %p330 = pneg %p200
        %p331 = pneg %p197
        %p332 = scmp.lt.s32.totalorder %s29, 0
        %s333 = scalar_select %p332, %s29, 0
        %s334 = smul.addr %s333, 8
        %s335 = scalar_lea.vmem %s5, %s334
        %s336 = sadd.s32 %s29, %s31
        %p337 = scmp.lt.s32.totalorder %s336, 0
        %s338 = scalar_select %p337, %s336, 0
        %s339 = smul.u32 2, %s338
        %s340 = sadd.s32 %s29, %s31
        %p341 = scmp.lt.s32.totalorder %s340, 0
        %s342 = scalar_select %p341, %s340, 0
        %s343 = smul.u32 2, %s342
        %p344 = scmp.lt.s32.totalorder %s29, 0
        %s345 = scalar_select %p344, %s29, 0
        %s346 = smul.addr %s345, 8
        %s347 = scalar_lea.vmem %s5, %s346
        %p348 = scmp.eq.s32.totalorder %s30, 0
        %p349 = scmp.eq.s32.totalorder %s31, 0
        %p350 = pnand %p348, %p349
        %p351 = pneg %p350
        // Predicated region
        $region49: #{tpu_custom_call.1} parent=35 // pred_check
          _
        $region50: #{tpu_custom_call.1} parent=35 // pred_check_branch
          %353 = sbr.rel (%p350) target = $region52
        $region51: #{tpu_custom_call.1} parent=35 // pred_region
          %vm354 = vcmask 64512
          %355 = vst.msk [vmem:[#allocation8] sm:$0xff] %vm354, 0.0
          %vm356 = vcmask 7168
          %357 = vst.msk [vmem:[%s347] sm:$0xff] %vm356, 0.0
        $region52: #{tpu_custom_call.1} parent=35 // pred_fallthru
          _
        %v358 = vld [vmem:[%s292] sm:$0xff]
        %v359 = vld [vmem:[%s292 + $0x8] sm:$0xff]
        %v360 = vld [vmem:[%s301] sm:$0x3]
        %v361 = vld [vmem:[#allocation7] sm:$0xff]
        %v362 = vld [vmem:[%s3] sm:$0xff]
        %s363 = sadd.s32 %s29, %s31
        %s364 = smul.u32 %s363, 256
        %v365 = vlaneseq
        %v366 = vand.u32 %v365, 127
        %v367 = vadd.s32 %v366, 128
        %v368 = vstv %s364
        %v369 = vadd.s32 %v368, %v366
        %v370 = vadd.s32 %v368, %v367
        %vm371 = vcmp.lt.s32.totalorder %v369, 256
        %vm372 = vcmp.lt.s32.totalorder %v370, 256
        %v373 = vlaneseq
        %v374 = vshrl.u32 %v373, 7
        %v375 = vsub.s32 0, %v374
        %v376 = vrot.slane %v360, %v375
        %v377 = vlaneseq
        %v378 = vshrl.u32 %v377, 7
        %v379 = vsub.s32 1, %v378
        %v380 = vrot.slane %v360, %v379
        %v381 = vsel %vm371, %v376, 4294967295
        %v382 = vsel %vm372, %v380, 4294967295
        %v383 = vlaneseq
        %v384 = vshrl.u32 %v383, 7
        %v385 = vlaneseq
        %v386 = vshrl.u32 %v385, 7
        %v387 = vsub.s32 0, %v386
        %v388 = vrot.slane %v381, %v387
        %v389 = vlaneseq
        %v390 = vshrl.u32 %v389, 7
        %v391 = vsub.s32 0, %v390
        %v392 = vrot.slane %v382, %v391
        %vm393 = vcmp.eq.s32.totalorder %v388, %v384
        %vm394 = vcmp.eq.s32.totalorder %v392, %v384
        %v395 = vsel %vm393, 1, 0
        %v396 = vsel %vm394, 1, 0
        %v397 = vcvt.s32.f32 %v395
        %v398 = vcvt.s32.f32 %v396
        %vm399 = vcmask 64512
        %v401 = vsel %vm399, %v361, 0
        %403 = vmatprep.subr.mxu0 %v398
        %404 = vmatpush1.msra.mxu0 %v397
        %405 = vmatprep.subr.mxu0 0.0
        %406 = vmatpush1.msra.mxu0 0.0
        %407 = vmatprep.subr.mxu0 0.0
        %408 = vmatpush1.msra.mxu0 0.0
        %409 = vmatprep.subr.mxu0 0.0
        %410 = vmatpush1.msra.mxu0 0.0
        %411 = vmatprep.subr.mxu0 0.0
        %412 = vmatpush1.msra.mxu0 0.0
        %413 = vmatprep.subr.mxu0 0.0
        %414 = vmatpush1.msra.mxu0 0.0
        %415 = vmatprep.subr.mxu0 0.0
        %416 = vmatpush1.msra.mxu0 0.0
        %417 = vmatprep.subr.mxu0 0.0
        %418 = vmatpush1.msra.mxu0 0.0
        %419 = vmatprep.subr.mxu0 0.0
        %420 = vmatpush1.msra.mxu0 0.0
        %421 = vmatprep.subr.mxu0 0.0
        %422 = vmatpush1.msra.mxu0 0.0
        %423 = vmatprep.subr.mxu0 0.0
        %424 = vmatpush1.msra.mxu0 0.0
        %425 = vmatprep.subr.mxu0 0.0
        %426 = vmatpush1.msra.mxu0 0.0
        %427 = vmatprep.subr.mxu0 0.0
        %428 = vmatpush1.msra.mxu0 0.0
        %429 = vmatprep.subr.mxu0 0.0
        %430 = vmatpush1.msra.mxu0 0.0
        %431 = vmatprep.subr.mxu0 0.0
        %432 = vmatpush1.msra.mxu0 0.0
        %433 = vmatprep.subr.mxu0 0.0
        %434 = vmatpush1.msra.mxu0 0.0
        %435 = vmatprep.subr.mxu0 0.0
        %436 = vmatpush1.msra.mxu0 0.0
        %437 = vmatprep.subr.mxu0 0.0
        %438 = vmatpush1.msra.mxu0 0.0
        %439 = vmatprep.subr.mxu0 0.0
        %440 = vmatpush1.msra.mxu0 0.0
        %441 = vmatprep.subr.mxu0 0.0
        %442 = vmatpush1.msra.mxu0 0.0
        %443 = vmatprep.subr.mxu0 0.0
        %444 = vmatpush1.msra.mxu0 0.0
        %445 = vmatprep.subr.mxu0 0.0
        %446 = vmatpush1.msra.mxu0 0.0
        %447 = vmatprep.subr.mxu0 0.0
        %448 = vmatpush1.msra.mxu0 0.0
        %449 = vmatprep.subr.mxu0 0.0
        %450 = vmatpush1.msra.mxu0 0.0
        %451 = vmatprep.subr.mxu0 0.0
        %452 = vmatpush1.msra.mxu0 0.0
        %453 = vmatprep.subr.mxu0 0.0
        %454 = vmatpush1.msra.mxu0 0.0
        %455 = vmatprep.subr.mxu0 0.0
        %456 = vmatpush1.msra.mxu0 0.0
        %457 = vmatprep.subr.mxu0 0.0
        %458 = vmatpush1.msra.mxu0 0.0
        %459 = vmatprep.subr.mxu0 0.0
        %460 = vmatpush1.msra.mxu0 0.0
        %461 = vmatprep.subr.mxu0 0.0
        %462 = vmatpush1.msra.mxu0 0.0
        %463 = vmatprep.subr.mxu0 0.0
        %464 = vmatpush1.msra.mxu0 0.0
        %465 = vmatprep.subr.mxu0 0.0
        %466 = vmatpush1.msra.mxu0 0.0
        %467 = vmatprep.mubr.f32.mxu0 0.0
        %468 = vmatmul.mubr.f32.gmra.mrb[0].mxu0 %v401
        %v469 = vpop.f32.mrb[0].mxu0
        %v470 = vadd.f32 0.0, %v469
        %v471 = vpop.f32.mrb[0].mxu0
        %v472 = vadd.f32 0.0, %v471
        %473 = vdwg.mxu0
        %v475 = vsel %vm399, %v362, 0
        %477 = vmatprep.subr.mxu0 %v398
        %478 = vmatpush1.msra.mxu0 %v397
        %479 = vmatprep.subr.mxu0 0.0
        %480 = vmatpush1.msra.mxu0 0.0
        %481 = vmatprep.subr.mxu0 0.0
        %482 = vmatpush1.msra.mxu0 0.0
        %483 = vmatprep.subr.mxu0 0.0
        %484 = vmatpush1.msra.mxu0 0.0
        %485 = vmatprep.subr.mxu0 0.0
        %486 = vmatpush1.msra.mxu0 0.0
        %487 = vmatprep.subr.mxu0 0.0
        %488 = vmatpush1.msra.mxu0 0.0
        %489 = vmatprep.subr.mxu0 0.0
        %490 = vmatpush1.msra.mxu0 0.0
        %491 = vmatprep.subr.mxu0 0.0
        %492 = vmatpush1.msra.mxu0 0.0
        %493 = vmatprep.subr.mxu0 0.0
        %494 = vmatpush1.msra.mxu0 0.0
        %495 = vmatprep.subr.mxu0 0.0
        %496 = vmatpush1.msra.mxu0 0.0
        %497 = vmatprep.subr.mxu0 0.0
        %498 = vmatpush1.msra.mxu0 0.0
        %499 = vmatprep.subr.mxu0 0.0
        %500 = vmatpush1.msra.mxu0 0.0
        %501 = vmatprep.subr.mxu0 0.0
        %502 = vmatpush1.msra.mxu0 0.0
        %503 = vmatprep.subr.mxu0 0.0
        %504 = vmatpush1.msra.mxu0 0.0
        %505 = vmatprep.subr.mxu0 0.0
        %506 = vmatpush1.msra.mxu0 0.0
        %507 = vmatprep.subr.mxu0 0.0
        %508 = vmatpush1.msra.mxu0 0.0
        %509 = vmatprep.subr.mxu0 0.0
        %510 = vmatpush1.msra.mxu0 0.0
        %511 = vmatprep.subr.mxu0 0.0
        %512 = vmatpush1.msra.mxu0 0.0
        %513 = vmatprep.subr.mxu0 0.0
        %514 = vmatpush1.msra.mxu0 0.0
        %515 = vmatprep.subr.mxu0 0.0
        %516 = vmatpush1.msra.mxu0 0.0
        %517 = vmatprep.subr.mxu0 0.0
        %518 = vmatpush1.msra.mxu0 0.0
        %519 = vmatprep.subr.mxu0 0.0
        %520 = vmatpush1.msra.mxu0 0.0
        %521 = vmatprep.subr.mxu0 0.0
        %522 = vmatpush1.msra.mxu0 0.0
        %523 = vmatprep.subr.mxu0 0.0
        %524 = vmatpush1.msra.mxu0 0.0
        %525 = vmatprep.subr.mxu0 0.0
        %526 = vmatpush1.msra.mxu0 0.0
        %527 = vmatprep.subr.mxu0 0.0
        %528 = vmatpush1.msra.mxu0 0.0
        %529 = vmatprep.subr.mxu0 0.0
        %530 = vmatpush1.msra.mxu0 0.0
        %531 = vmatprep.subr.mxu0 0.0
        %532 = vmatpush1.msra.mxu0 0.0
        %533 = vmatprep.subr.mxu0 0.0
        %534 = vmatpush1.msra.mxu0 0.0
        %535 = vmatprep.subr.mxu0 0.0
        %536 = vmatpush1.msra.mxu0 0.0
        %537 = vmatprep.subr.mxu0 0.0
        %538 = vmatpush1.msra.mxu0 0.0
        %539 = vmatprep.subr.mxu0 0.0
        %540 = vmatpush1.msra.mxu0 0.0
        %541 = vmatprep.mubr.f32.mxu0 0.0
        %542 = vmatmul.mubr.f32.gmra.mrb[0].mxu0 %v475
        %v543 = vpop.f32.mrb[0].mxu0
        %v544 = vadd.f32 0.0, %v543
        %v545 = vpop.f32.mrb[0].mxu0
        %v546 = vadd.f32 0.0, %v545
        %547 = vdwg.mxu0
        %v548 = vsub.f32 %v358, %v470
        %v549 = vsub.f32 %v359, %v472
        %v550 = vand.u32 2147483647, %v548
        %v551 = vand.u32 2147483647, %v549
        %v552 = vmul.f32 %v550, %v544
        %v553 = vmul.f32 %v551, %v546
        %v554 = vsub.f32 %v552, 0.1
        %v555 = vsub.f32 %v553, 0.1
        %v556 = vmax.f32 %v554, 0.0
        %v557 = vmax.f32 %v555, 0.0
        %v558 = vsel %vm371, 1, 0
        %v559 = vsel %vm372, 1, 0
        %vm560 = vcmp.eq.s32.totalorder %v558, 1
        %vm561 = vcmp.eq.s32.totalorder %v559, 1
        %v562 = vsel %vm560, %v556, 0.0
        %v563 = vsel %vm561, %v557, 0.0
        %564 = vmatprep.subr.mxu0 %v563
        %565 = vmatpush1.xpose.msra.mxu0 %v562
        %566 = vmatprep.subr.mxu0 0.0
        %567 = vmatpush1.xpose.msra.mxu0 0.0
        %568 = vmatprep.subr.mxu0 0.0
        %569 = vmatpush1.xpose.msra.mxu0 0.0
        %570 = vmatprep.subr.mxu0 0.0
        %571 = vmatpush1.xpose.msra.mxu0 0.0
        %572 = vmatprep.subr.mxu0 0.0
        %573 = vmatpush1.xpose.msra.mxu0 0.0
        %574 = vmatprep.subr.mxu0 0.0
        %575 = vmatpush1.xpose.msra.mxu0 0.0
        %576 = vmatprep.subr.mxu0 0.0
        %577 = vmatpush1.xpose.msra.mxu0 0.0
        %578 = vmatprep.subr.mxu0 0.0
        %579 = vmatpush1.xpose.msra.mxu0 0.0
        %580 = vmatprep.subr.mxu0 0.0
        %581 = vmatpush1.xpose.msra.mxu0 0.0
        %582 = vmatprep.subr.mxu0 0.0
        %583 = vmatpush1.xpose.msra.mxu0 0.0
        %584 = vmatprep.subr.mxu0 0.0
        %585 = vmatpush1.xpose.msra.mxu0 0.0
        %586 = vmatprep.subr.mxu0 0.0
        %587 = vmatpush1.xpose.msra.mxu0 0.0
        %588 = vmatprep.subr.mxu0 0.0
        %589 = vmatpush1.xpose.msra.mxu0 0.0
        %590 = vmatprep.subr.mxu0 0.0
        %591 = vmatpush1.xpose.msra.mxu0 0.0
        %592 = vmatprep.subr.mxu0 0.0
        %593 = vmatpush1.xpose.msra.mxu0 0.0
        %594 = vmatprep.subr.mxu0 0.0
        %595 = vmatpush1.xpose.msra.mxu0 0.0
        %596 = vmatprep.subr.mxu0 0.0
        %597 = vmatpush1.xpose.msra.mxu0 0.0
        %598 = vmatprep.subr.mxu0 0.0
        %599 = vmatpush1.xpose.msra.mxu0 0.0
        %600 = vmatprep.subr.mxu0 0.0
        %601 = vmatpush1.xpose.msra.mxu0 0.0
        %602 = vmatprep.subr.mxu0 0.0
        %603 = vmatpush1.xpose.msra.mxu0 0.0
        %604 = vmatprep.subr.mxu0 0.0
        %605 = vmatpush1.xpose.msra.mxu0 0.0
        %606 = vmatprep.subr.mxu0 0.0
        %607 = vmatpush1.xpose.msra.mxu0 0.0
        %608 = vmatprep.subr.mxu0 0.0
        %609 = vmatpush1.xpose.msra.mxu0 0.0
        %610 = vmatprep.subr.mxu0 0.0
        %611 = vmatpush1.xpose.msra.mxu0 0.0
        %612 = vmatprep.subr.mxu0 0.0
        %613 = vmatpush1.xpose.msra.mxu0 0.0
        %614 = vmatprep.subr.mxu0 0.0
        %615 = vmatpush1.xpose.msra.mxu0 0.0
        %616 = vmatprep.subr.mxu0 0.0
        %617 = vmatpush1.xpose.msra.mxu0 0.0
        %618 = vmatprep.subr.mxu0 0.0
        %619 = vmatpush1.xpose.msra.mxu0 0.0
        %620 = vmatprep.subr.mxu0 0.0
        %621 = vmatpush1.xpose.msra.mxu0 0.0
        %622 = vmatprep.subr.mxu0 0.0
        %623 = vmatpush1.xpose.msra.mxu0 0.0
        %624 = vmatprep.subr.mxu0 0.0
        %625 = vmatpush1.xpose.msra.mxu0 0.0
        %626 = vmatprep.subr.mxu0 0.0
        %627 = vmatpush1.xpose.msra.mxu0 0.0
        %628 = vmatprep.mubr.f32.mxu0 %v398
        %629 = vmatmul.mubr.f32.gmra.mrb[0].mxu0 %v397
        %v630 = vpop.f32.mrb[0].mxu0
        %v631 = vadd.f32 0.0, %v630
        %v632 = vpop.f32.mrb[0].mxu0
        %633 = vdwg.mxu0
        %v634 = vld [vmem:[#allocation8] sm:$0xff]
        %v635 = vadd.f32 %v634, %v631
        %636 = vst.msk [vmem:[#allocation8] sm:$0xff] %vm399, %v635
        %v637 = vld [vmem:[%s347] sm:$0xff]
        %v638 = vadd.f32 %v397, %v398
        %639 = vadd.xlane.f32.xlu0 %v638
        %v640 = vpop.xlane.xlu0 %639
        %v641 = vadd.f32 %v637, %v640
        %vm642 = vcmask 7168
        %643 = vst.msk [vmem:[%s347] sm:$0xff] %vm642, %v641
        %p644 = scmp.lt.s32.totalorder %s29, 0
        %s645 = scalar_select %p644, %s29, 0
        %s646 = smul.addr %s645, 8
        %s647 = scalar_lea.vmem %s5, %s646
        // Predicated region
        $region53: #{tpu_custom_call.1} parent=35 // pred_check
          %p648 = pneg %p171
        $region54: #{tpu_custom_call.1} parent=35 // pred_check_branch
          %650 = sbr.rel (%p648) target = $region56
        $region55: #{tpu_custom_call.1} parent=35 // pred_region
          %s652 = ssub.s32 128, 128
          %653 = vsyncadd [#allocation4], %s652
          %s654 = smul.addr %s29, 128
          %s655 = scalar_lea.hbm %s4, %s654
          %s657 = sshll.u32 [#allocation8], 4
          %s658 = int_to_ptr.vmem [resolvable:$true] %s657
          %660 = dma.vmem_to_hbm [thread:$0]  %s658, 128, %s655, [#allocation4]
        $region56: #{tpu_custom_call.1} parent=35 // pred_fallthru
          _
        // Predicated region
        $region57: #{tpu_custom_call.1} parent=35 // pred_check
          %p661 = pneg %p197
        $region58: #{tpu_custom_call.1} parent=35 // pred_check_branch
          %663 = sbr.rel (%p661) target = $region60
        $region59: #{tpu_custom_call.1} parent=35 // pred_region
          _
        $region60: #{tpu_custom_call.1} parent=35 // pred_fallthru
          _
        // Predicated region
        $region61: #{tpu_custom_call.1} parent=35 // pred_check
          %p664 = pneg %p171
        $region62: #{tpu_custom_call.1} parent=35 // pred_check_branch
          %666 = sbr.rel (%p664) target = $region64
        $region63: #{tpu_custom_call.1} parent=35 // pred_region
          %667 = dma.done [#allocation4], 128
        $region64: #{tpu_custom_call.1} parent=35 // pred_fallthru
          _
        // Predicated region
        $region65: #{tpu_custom_call.1} parent=35 // pred_check
          %p668 = pneg %p197
        $region66: #{tpu_custom_call.1} parent=35 // pred_check_branch
          %670 = sbr.rel (%p668) target = $region68
        $region67: #{tpu_custom_call.1} parent=35 // pred_region
          %p671 = scmp.lt.s32.totalorder %s29, 0
          %s672 = scalar_select %p671, %s29, 0
          %s673 = smul.addr %s672, 8
          %s674 = scalar_lea.vmem %s5, %s673
        $region68: #{tpu_custom_call.1} parent=35 // pred_fallthru
          _
      $region36: #{tpu_custom_call.1} parent=5 // pred_fallthru
        _
      %p675 = scmp.le.s32.totalorder 2, %s19
      // Predicated region
      $region69: #{tpu_custom_call.1} parent=5 // pred_check
        %p676 = pneg %p675
      $region70: #{tpu_custom_call.1} parent=5 // pred_check_branch
        %678 = sbr.rel (%p676) target = $region72
      $region71: #{tpu_custom_call.1} parent=5 // pred_region
        %s679 = ssub.s32 %s19, 2
      $region72: #{tpu_custom_call.1} parent=5 // pred_fallthru
        _
    $region6: #{tpu_custom_call.1} parent=1 // loop_footer
      %s23 = sadd.s32 1, %s19
    $region7: #{tpu_custom_call.1} parent=1 // loop_footer_branch
      %18 = sbr.rel target = $region3
    $region8: #{tpu_custom_call.1} parent=1 // loop_exit
      _
    %680 = vsyncpa [#allocation3], 1
    %s681 = scalar_lea.sflag [#allocation3], 1
    %682 = vsyncpa %s681, 1
    %683 = vsyncpa [#allocation6], 1
    %s684 = scalar_lea.sflag [#allocation6], 1
    %685 = vsyncpa %s684, 1
    %686 = vsyncpa [#allocation4], 1
    %s687 = scalar_lea.sflag [#allocation4], 1
    %688 = vsyncpa %s687, 1

</llo_original>
